<compile_context>
chip_gen: v6e
topology: v6e:2x2x1
jax: 0.10.0
libtpu: 0.0.40
codegen_flags: <defaults>
</compile_context>

<pallas_src>
import jax
import jax.numpy as jnp
from jax.experimental import pallas as pl
from jax.experimental.pallas import tpu as pltpu

NEG_SLOPE = 0.01   # torch.nn.LeakyReLU default
LANE = 128         # last-dim blocks: multiples of 128 (or full extent)
SUBLANE = 8        # second-to-last-dim blocks: multiples of 8 (or full extent)


def _round_up(x, m):
    return (x + m - 1) // m * m


# ----------------------------------------------------------------------------
# Hardware capability queries (perf-only; safe fallbacks, never mask compiles)
# ----------------------------------------------------------------------------

def _device_kind():
    try:
        return jax.devices()[0].device_kind.lower()
    except Exception:
        return ""


def _tpu_vmem_capacity_bytes():
    try:
        cap = int(getattr(pltpu.get_tpu_info(), "vmem_capacity_bytes", 0))
        if cap > 0:
            return cap
    except Exception:
        pass
    kind = _device_kind()
    if "v7" in kind or "7x" in kind:
        return 64 * 1024 * 1024     # v7x: 64 MiB per TensorCore
    return 128 * 1024 * 1024        # v5e/v6e: 128 MiB


def _num_tensorcores_per_chip():
    kind = _device_kind()
    if "v7" in kind or "7x" in kind:
        return 2
    return 1


def _auto_act_dtype():
    """bf16 bias/LeakyReLU on chips with a bf16 VALU (v6e/v7x); f32 otherwise."""
    kind = _device_kind()
    if "v6" in kind or "v7" in kind or "7x" in kind:
        return jnp.dtype(jnp.bfloat16)
    return jnp.dtype(jnp.float32)


# ----------------------------------------------------------------------------
# One-time probe: can this jax/Mosaic lower pl.Buffered(1) weight specs?
# (Keeps the real pallas_call unguarded so genuine errors are never masked.)
# ----------------------------------------------------------------------------

_SINGLE_BUFFER_WEIGHTS = None


def _probe_single_buffer_weights():
    global _SINGLE_BUFFER_WEIGHTS
    if _SINGLE_BUFFER_WEIGHTS is not None:
        return _SINGLE_BUFFER_WEIGHTS
    try:
        def _k(x_ref, w_ref, o_ref):
            o_ref[...] = x_ref[...] + w_ref[...]

        probe = pl.pallas_call(
            _k,
            out_shape=jax.ShapeDtypeStruct((8, 128), jnp.float32),
            grid_spec=pltpu.PrefetchScalarGridSpec(
                num_scalar_prefetch=0,
                grid=(1,),
                in_specs=[
                    pl.BlockSpec((8, 128), lambda i: (0, 0)),
                    pl.BlockSpec((8, 128), lambda i: (0, 0),
                                 pipeline_mode=pl.Buffered(1)),
                ],
                out_specs=pl.BlockSpec((8, 128), lambda i: (0, 0)),
            ),
        )
        z = jnp.zeros((8, 128), jnp.float32)
        jax.block_until_ready(probe(z, z))
        _SINGLE_BUFFER_WEIGHTS = True
    except Exception:
        _SINGLE_BUFFER_WEIGHTS = False
    return _SINGLE_BUFFER_WEIGHTS


# ----------------------------------------------------------------------------
# Kernel
# ----------------------------------------------------------------------------

def _leaky_relu(x):
    return jnp.where(x > 0, x, NEG_SLOPE * x)


def _make_kernel(n_layers, sub_rows, n_sub, act_dtype, compute_dtype):
    """Fused forward: per row sub-block, n_layers MXU matmuls (bf16 in, f32 acc)
    with bias/LeakyReLU in `act_dtype` on the VPU. Static sub-block unroll lets
    the scheduler overlap MXU work of one sub-block with VPU work of another."""

    def kernel(*refs):
        x_ref = refs[0]
        o_ref = refs[-1]
        layer_refs = refs[1:-1]            # w0, b0, w1, b1, ...
        for s in range(n_sub):
            rows = pl.ds(s * sub_rows, sub_rows)
            h = x_ref[rows, :].astype(compute_dtype)
            for li in range(n_layers):
                w_ref = layer_refs[2 * li]
                b_ref = layer_refs[2 * li + 1]
                acc = jnp.dot(h, w_ref[...], preferred_element_type=jnp.float32)
                if li == n_layers - 1:
                    out = acc + b_ref[...]                       # final bias add in f32
                    o_ref[rows, :] = out.astype(o_ref.dtype)
                else:
                    a = acc.astype(act_dtype) + b_ref[...].astype(act_dtype)
                    h = _leaky_relu(a).astype(compute_dtype)

    return kernel


# ----------------------------------------------------------------------------
# Parameter prep (one-time, NOT per forward)
# ----------------------------------------------------------------------------

def prepare_pepita_params(params, *, compute_dtype=jnp.bfloat16):
    """Transpose PyTorch (out,in) weights to lane-dense (in,out), zero-pad the
    output feature dims up to multiples of 128, cast weights to compute_dtype.
    The first layer's row dim stays un-padded (x is loaded full-extent f32).
    Biases stay f32 (cast to the activation dtype inside the kernel)."""
    dims = [params[0][0].shape[1]] + [w.shape[0] for (w, _) in params]
    pads = [dims[0]] + [_round_up(d, LANE) for d in dims[1:]]

    prepared = []
    for i, (w, b) in enumerate(params):
        rows_p, cols_p = pads[i], pads[i + 1]
        wt = jnp.asarray(w).T.astype(compute_dtype)
        wt = jnp.pad(wt, ((0, rows_p - wt.shape[0]), (0, cols_p - wt.shape[1])))
        bb = jnp.asarray(b).reshape(1, -1).astype(jnp.float32)
        bb = jnp.pad(bb, ((0, 0), (0, cols_p - bb.shape[1])))
        prepared.extend((wt, bb))

    meta = dict(in_dim=dims[0], out_dim=dims[-1], dims=tuple(dims),
                pads=tuple(pads), n_layers=len(params),
                compute_dtype=jnp.dtype(compute_dtype))
    return tuple(prepared), meta


# ----------------------------------------------------------------------------
# Tile selection
# ----------------------------------------------------------------------------

def _pick_tile_b(b_pad, meta, x_itemsize, out_itemsize, *, weight_buffers,
                 vmem_budget_bytes, tile_cap, min_grid_steps, requested=None):
    pads = meta["pads"]
    in_dim = meta["in_dim"]
    cbytes = jnp.dtype(meta["compute_dtype"]).itemsize
    w_bytes = sum(pads[i] * pads[i + 1] for i in range(meta["n_layers"])) * cbytes
    b_bytes = sum(pads[1:]) * 4
    fixed = weight_buffers * (w_bytes + b_bytes)
    hidden = sum(pads[1:-1])

    if requested is not None:
        tile = max(SUBLANE, _round_up(min(int(requested), b_pad), SUBLANE))
    else:
        tile = max(SUBLANE, min(tile_cap, b_pad))
        if min_grid_steps > 1 and b_pad >= min_grid_steps * SUBLANE:
            # ensure >= min_grid_steps grid steps (v7x: keep both TensorCores busy)
            tile = min(tile, max(SUBLANE, _round_up(pl.cdiv(b_pad, min_grid_steps), SUBLANE)))

    def footprint(t):
        x_io = 2 * t * in_dim * x_itemsize          # double-buffered f32 input tile
        o_io = 2 * t * pads[-1] * out_itemsize      # double-buffered output tile
        act = t * hidden * 4                        # f32 accumulators / intermediates
        return fixed + x_io + o_io + act

    while tile > SUBLANE and footprint(tile) > vmem_budget_bytes:
        tile = max(SUBLANE, _round_up(tile // 2, SUBLANE))

    if footprint(tile) > vmem_budget_bytes:
        # TODO(synk): add a weight-tiling / K-streaming path (second grid axis +
        # f32 accumulator scratch) for models whose padded weights exceed VMEM.
        raise ValueError(
            f"PEPITA resident weights ({fixed / 2**20:.1f} MiB x{weight_buffers} buffers) "
            f"exceed the VMEM budget ({vmem_budget_bytes / 2**20:.1f} MiB); "
            "weight tiling is not implemented.")
    return tile


def _pick_sub_rows(tb, target=256):
    """Largest divisor of tb that is <= target and a multiple of 8."""
    if tb <= target:
        return tb
    for d in range(target - target % SUBLANE, SUBLANE - 1, -SUBLANE):
        if tb % d == 0:
            return d
    return tb


# ----------------------------------------------------------------------------
# Forward wrapper (intended to be jit-ed so pad/slice fuse with the caller)
# ----------------------------------------------------------------------------

def pepita_forward(x, prepared, meta, *, tile_b=None, act_dtype=None,
                   out_dtype=None, vmem_limit_bytes=None):
    """Fused PEPITA forward. `prepared, meta = prepare_pepita_params(params)`."""
    B, in_dim = x.shape
    assert in_dim == meta["in_dim"], "input feature dim mismatch"
    out_dtype = jnp.dtype(x.dtype) if out_dtype is None else jnp.dtype(out_dtype)
    act_dtype = _auto_act_dtype() if act_dtype is None else jnp.dtype(act_dtype)

    cap = _tpu_vmem_capacity_bytes()
    if vmem_limit_bytes is None:
        vmem_limit_bytes = int(0.9 * cap)
    budget = min(int(0.7 * cap), int(0.8 * vmem_limit_bytes))

    single_buf_w = _probe_single_buffer_weights()
    weight_buffers = 1 if single_buf_w else 2

    n_tc = _num_tensorcores_per_chip()
    tile_cap = 512 if n_tc > 1 else 2048
    min_grid_steps = 2 if n_tc > 1 else 1

    b8 = _round_up(B, SUBLANE)
    tb = _pick_tile_b(b8, meta, jnp.dtype(x.dtype).itemsize, out_dtype.itemsize,
                      weight_buffers=weight_buffers, vmem_budget_bytes=budget,
                      tile_cap=tile_cap, min_grid_steps=min_grid_steps,
                      requested=tile_b)
    b_pad = _round_up(b8, tb)
    grid = (b_pad // tb,)

    xk = x if b_pad == B else jnp.pad(x, ((0, b_pad - B), (0, 0)))

    sub_rows = _pick_sub_rows(tb)
    n_sub = tb // sub_rows
    kernel = _make_kernel(meta["n_layers"], sub_rows, n_sub, act_dtype,
                          meta["compute_dtype"])

    pads = meta["pads"]
    wmode = pl.Buffered(1) if single_buf_w else None

    def const_spec(shape):
        if wmode is None:
            return pl.BlockSpec(shape, lambda i: (0, 0))
        return pl.BlockSpec(shape, lambda i: (0, 0), pipeline_mode=wmode)

    in_specs = [pl.BlockSpec((tb, in_dim), lambda i: (i, 0))]   # f32 x, full-extent last dim
    for li in range(meta["n_layers"]):
        in_specs.append(const_spec((pads[li], pads[li + 1])))   # weight (in, out), bf16
        in_specs.append(const_spec((1, pads[li + 1])))          # bias (1, out), f32

    fwd = pl.pallas_call(
        kernel,
        out_shape=jax.ShapeDtypeStruct((b_pad, pads[-1]), out_dtype),
        grid_spec=pltpu.PrefetchScalarGridSpec(
            num_scalar_prefetch=0,
            grid=grid,
            in_specs=in_specs,
            out_specs=pl.BlockSpec((tb, pads[-1]), lambda i: (i, 0)),
        ),
        compiler_params=pltpu.CompilerParams(
            dimension_semantics=("parallel",),
            vmem_limit_bytes=vmem_limit_bytes,
        ),
    )
    out_padded = fwd(xk, *prepared)
    return out_padded[:B, :meta["out_dim"]]


# ----------------------------------------------------------------------------
# Init + references
# ----------------------------------------------------------------------------

def init_pepita_params(key, in_dim, n_layers=3, dim_mult=1, out_dim=None):
    """Deterministic init matching the module's shapes (PyTorch Linear-style uniform)."""
    if out_dim is None:
        out_dim = in_dim
    if isinstance(dim_mult, (int, float)):
        dim_mult = [dim_mult] * (n_layers - 1)
    dims = []
    prev = in_dim
    for i in range(n_layers - 1):
        d = int(in_dim * dim_mult[i])
        dims.append((prev, d))
        prev = d
    dims.append((prev, out_dim))

    params = []
    for (din, dout) in dims:
        key, kw, kb = jax.random.split(key, 3)
        bound = 1.0 / jnp.sqrt(din)
        W = jax.random.uniform(kw, (dout, din), jnp.float32, -bound, bound)
        b = jax.random.uniform(kb, (dout,), jnp.float32, -bound, bound)
        params.append((W, b))
    # NOTE: back_layer (out_dim -> in_dim) exists in __init__ but is unused in forward().
    # TODO(synk): train_step (Hebbian PEPITA update with back_layer) is not part of forward().
    return params


def pepita_forward_ref(x, params, *, compute_dtype=None, act_dtype=None):
    """Plain-JAX reference of the PyTorch forward; optionally mirrors the kernel's
    bf16 matmul-input casts and activation dtype (f32 accumulation either way)."""
    h = x
    n = len(params)
    for i, (W, b) in enumerate(params):
        lhs, rhs = h, W.T
        if compute_dtype is not None:
            lhs, rhs = lhs.astype(compute_dtype), rhs.astype(compute_dtype)
        acc = jnp.dot(lhs, rhs, preferred_element_type=jnp.float32)
        if i != n - 1:
            a, bb = acc, b
            if act_dtype is not None:
                a, bb = a.astype(act_dtype), bb.astype(act_dtype)
            a = a + bb
            h = jnp.where(a > 0, a, NEG_SLOPE * a)
        else:
            h = acc + b
    return h.astype(jnp.float32)


if __name__ == "__main__":
    key = jax.random.PRNGKey(0)
    k_x, k_p = jax.random.split(key)

    B, in_dim = 8, 32
    x = jax.random.normal(k_x, (B, in_dim), jnp.float32)
    params = init_pepita_params(k_p, in_dim, n_layers=3, dim_mult=1, out_dim=None)

    prepared, meta = prepare_pepita_params(params)   # one-time weight prep (transpose/pad/cast)
    act_dt = _auto_act_dtype()                       # bf16 on v6e/v7x, f32 on v5e and older

    fwd = jax.jit(lambda xx: pepita_forward(xx, prepared, meta, act_dtype=act_dt))
    out = jax.block_until_ready(fwd(x))

    assert out.shape == (B, in_dim)
    ref_mixed = pepita_forward_ref(x, params, compute_dtype=jnp.bfloat16, act_dtype=act_dt)
    assert jnp.allclose(out, ref_mixed, atol=2e-2, rtol=2e-2), "mismatch vs precision-matched reference"
    ref_f32 = pepita_forward_ref(x, params)
    assert float(jnp.max(jnp.abs(out - ref_f32))) < 1e-1, "mismatch vs f32 reference"

    print("KERNEL_OK")
</pallas_src>

<mosaic_0001>
module attributes {stable_mosaic.version = 11 : i64} {
  func.func @kernel(%arg0: i32, %arg1: memref<8x32xf32, #tpu.memory_space<vmem>>, %arg2: memref<32x128xbf16, #tpu.memory_space<vmem>>, %arg3: memref<1x128xf32, #tpu.memory_space<vmem>>, %arg4: memref<128x128xbf16, #tpu.memory_space<vmem>>, %arg5: memref<1x128xf32, #tpu.memory_space<vmem>>, %arg6: memref<128x128xbf16, #tpu.memory_space<vmem>>, %arg7: memref<1x128xf32, #tpu.memory_space<vmem>>, %arg8: memref<8x128xf32, #tpu.memory_space<vmem>>) attributes {dimension_semantics = [#tpu.dimension_semantics<parallel>], iteration_bounds = array<i64: 1>, scalar_prefetch = 0 : i64, scratch_operands = 0 : i64, tpu.core_type = #tpu.core_type<tc>, window_params = [{transform_indices = @transform_0, window_bounds = array<i64: 8, 32>}, {pipeline_mode = #tpu.pipeline_mode<synchronous>, transform_indices = @transform_1, window_bounds = array<i64: 32, 128>}, {pipeline_mode = #tpu.pipeline_mode<synchronous>, transform_indices = @transform_2, window_bounds = array<i64: 1, 128>}, {pipeline_mode = #tpu.pipeline_mode<synchronous>, transform_indices = @transform_3, window_bounds = array<i64: 128, 128>}, {pipeline_mode = #tpu.pipeline_mode<synchronous>, transform_indices = @transform_4, window_bounds = array<i64: 1, 128>}, {pipeline_mode = #tpu.pipeline_mode<synchronous>, transform_indices = @transform_5, window_bounds = array<i64: 128, 128>}, {pipeline_mode = #tpu.pipeline_mode<synchronous>, transform_indices = @transform_6, window_bounds = array<i64: 1, 128>}, {transform_indices = @transform_7, window_bounds = array<i64: 8, 128>}]} {
    %c0 = arith.constant 0 : index
    %c0_0 = arith.constant 0 : index
    %0 = vector.load %arg1[%c0, %c0_0] : memref<8x32xf32, #tpu.memory_space<vmem>>, vector<8x32xf32>
    %1 = arith.truncf %0 : vector<8x32xf32> to vector<8x32xbf16>
    %c0_1 = arith.constant 0 : index
    %c0_2 = arith.constant 0 : index
    %2 = vector.load %arg2[%c0_1, %c0_2] : memref<32x128xbf16, #tpu.memory_space<vmem>>, vector<32x128xbf16>
    %cst = arith.constant dense<0.000000e+00> : vector<8x128xf32>
    %3 = tpu.matmul %1, %2, %cst {dimension_numbers = #tpu.dot_dimension_numbers<[1], [0], [0], [1], [0, 0, 1, 1], [], []>} : vector<8x32xbf16>, vector<32x128xbf16>, vector<8x128xf32> -> vector<8x128xf32>
    %c0_3 = arith.constant 0 : index
    %c0_4 = arith.constant 0 : index
    %4 = vector.load %arg3[%c0_3, %c0_4] : memref<1x128xf32, #tpu.memory_space<vmem>>, vector<1x128xf32>
    %5 = vector.broadcast %4 : vector<1x128xf32> to vector<8x128xf32>
    %6 = arith.addf %3, %5 : vector<8x128xf32>
    %cst_5 = arith.constant 0.000000e+00 : f32
    %7 = vector.broadcast %cst_5 : f32 to vector<8x128xf32>
    %8 = arith.cmpf ogt, %6, %7 : vector<8x128xf32>
    %cst_6 = arith.constant 0.00999999977 : f32
    %9 = vector.broadcast %cst_6 : f32 to vector<8x128xf32>
    %10 = arith.mulf %9, %6 : vector<8x128xf32>
    %11 = arith.select %8, %6, %10 : vector<8x128xi1>, vector<8x128xf32>
    %12 = arith.truncf %11 : vector<8x128xf32> to vector<8x128xbf16>
    %c0_7 = arith.constant 0 : index
    %c0_8 = arith.constant 0 : index
    %13 = vector.load %arg4[%c0_7, %c0_8] : memref<128x128xbf16, #tpu.memory_space<vmem>>, vector<128x128xbf16>
    %cst_9 = arith.constant dense<0.000000e+00> : vector<8x128xf32>
    %14 = tpu.matmul %12, %13, %cst_9 {dimension_numbers = #tpu.dot_dimension_numbers<[1], [0], [0], [1], [0, 0, 1, 1], [], []>} : vector<8x128xbf16>, vector<128x128xbf16>, vector<8x128xf32> -> vector<8x128xf32>
    %c0_10 = arith.constant 0 : index
    %c0_11 = arith.constant 0 : index
    %15 = vector.load %arg5[%c0_10, %c0_11] : memref<1x128xf32, #tpu.memory_space<vmem>>, vector<1x128xf32>
    %16 = vector.broadcast %15 : vector<1x128xf32> to vector<8x128xf32>
    %17 = arith.addf %14, %16 : vector<8x128xf32>
    %cst_12 = arith.constant 0.000000e+00 : f32
    %18 = vector.broadcast %cst_12 : f32 to vector<8x128xf32>
    %19 = arith.cmpf ogt, %17, %18 : vector<8x128xf32>
    %cst_13 = arith.constant 0.00999999977 : f32
    %20 = vector.broadcast %cst_13 : f32 to vector<8x128xf32>
    %21 = arith.mulf %20, %17 : vector<8x128xf32>
    %22 = arith.select %19, %17, %21 : vector<8x128xi1>, vector<8x128xf32>
    %23 = arith.truncf %22 : vector<8x128xf32> to vector<8x128xbf16>
    %c0_14 = arith.constant 0 : index
    %c0_15 = arith.constant 0 : index
    %24 = vector.load %arg6[%c0_14, %c0_15] : memref<128x128xbf16, #tpu.memory_space<vmem>>, vector<128x128xbf16>
    %cst_16 = arith.constant dense<0.000000e+00> : vector<8x128xf32>
    %25 = tpu.matmul %23, %24, %cst_16 {dimension_numbers = #tpu.dot_dimension_numbers<[1], [0], [0], [1], [0, 0, 1, 1], [], []>} : vector<8x128xbf16>, vector<128x128xbf16>, vector<8x128xf32> -> vector<8x128xf32>
    %c0_17 = arith.constant 0 : index
    %c0_18 = arith.constant 0 : index
    %26 = vector.load %arg7[%c0_17, %c0_18] : memref<1x128xf32, #tpu.memory_space<vmem>>, vector<1x128xf32>
    %27 = vector.broadcast %26 : vector<1x128xf32> to vector<8x128xf32>
    %28 = arith.addf %25, %27 : vector<8x128xf32>
    %c0_19 = arith.constant 0 : index
    %c0_20 = arith.constant 0 : index
    %29 = vector.load %arg8[%c0_19, %c0_20] : memref<8x128xf32, #tpu.memory_space<vmem>>, vector<8x128xf32>
    tpu.vector_store %arg8[%c0_19, %c0_20], %28 {strides = array<i32>} : memref<8x128xf32, #tpu.memory_space<vmem>>, vector<8x128xf32>,
    return
  }
  func.func @transform_0(%arg0: i32) -> (i32, i32) {
    %c0_i32 = arith.constant 0 : i32
    %c0_i32_0 = arith.constant 0 : i32
    return %arg0, %c0_i32 : i32, i32
  }
  func.func @transform_1(%arg0: i32) -> (i32, i32) {
    %c0_i32 = arith.constant 0 : i32
    %c0_i32_0 = arith.constant 0 : i32
    %c0_i32_1 = arith.constant 0 : i32
    return %c0_i32, %c0_i32_0 : i32, i32
  }
  func.func @transform_2(%arg0: i32) -> (i32, i32) {
    %c0_i32 = arith.constant 0 : i32
    %c0_i32_0 = arith.constant 0 : i32
    %c0_i32_1 = arith.constant 0 : i32
    return %c0_i32, %c0_i32_0 : i32, i32
  }
  func.func @transform_3(%arg0: i32) -> (i32, i32) {
    %c0_i32 = arith.constant 0 : i32
    %c0_i32_0 = arith.constant 0 : i32
    %c0_i32_1 = arith.constant 0 : i32
    return %c0_i32, %c0_i32_0 : i32, i32
  }
  func.func @transform_4(%arg0: i32) -> (i32, i32) {
    %c0_i32 = arith.constant 0 : i32
    %c0_i32_0 = arith.constant 0 : i32
    %c0_i32_1 = arith.constant 0 : i32
    return %c0_i32, %c0_i32_0 : i32, i32
  }
  func.func @transform_5(%arg0: i32) -> (i32, i32) {
    %c0_i32 = arith.constant 0 : i32
    %c0_i32_0 = arith.constant 0 : i32
    %c0_i32_1 = arith.constant 0 : i32
    return %c0_i32, %c0_i32_0 : i32, i32
  }
  func.func @transform_6(%arg0: i32) -> (i32, i32) {
    %c0_i32 = arith.constant 0 : i32
    %c0_i32_0 = arith.constant 0 : i32
    %c0_i32_1 = arith.constant 0 : i32
    return %c0_i32, %c0_i32_0 : i32, i32
  }
  func.func @transform_7(%arg0: i32) -> (i32, i32) {
    %c0_i32 = arith.constant 0 : i32
    %c0_i32_0 = arith.constant 0 : i32
    return %arg0, %c0_i32 : i32, i32
  }
}

</mosaic_0001>

<llo_original>
// kernel: _lambda_.1
$region0: #{_lambda_.1}
  #allocation0 [shape = 'u32[]', space=smem, size = 0x4, offset = 0x4, fixed_abs, tag = 'smem constant byte address 0x4 - core index']
  #allocation1 [shape = 'u32[144,128]{1,0:T(1,128)}', space=vmem, size = 0x12000, scoped, tag = 'internal scratch']
  %s0 = inlined_call_operand.hbm [shape: f32[8,32], index: 0, kind: input, shape index: {}]
  %s1 = inlined_call_operand.hbm [shape: bf16[32,128], index: 1, kind: input, shape index: {}]
  %s2 = inlined_call_operand.vmem [shape: f32[1,128], index: 2, kind: input, shape index: {}]
  %s3 = inlined_call_operand.hbm [shape: bf16[128,128], index: 3, kind: input, shape index: {}]
  %s4 = inlined_call_operand.vmem [shape: f32[1,128], index: 4, kind: input, shape index: {}]
  %s5 = inlined_call_operand.hbm [shape: bf16[128,128], index: 5, kind: input, shape index: {}]
  %s6 = inlined_call_operand.vmem [shape: f32[1,128], index: 6, kind: input, shape index: {}]
  %s7 = inlined_call_operand.hbm [shape: f32[8,128], index: 7, kind: output, shape index: {}]
  %s8 = sld [smem:[#allocation0]]
  $region54: #{_lambda_.1} parent=0
    _
  %s10 = ssub.s32 1, %s8
  %s11 = scalar_select 0, %s10, %s8
  $region1: #{_lambda_.1} parent=0
    #allocation2 [shape = 'u8[4096]{0}', space=vmem, size = 0x1000, scoped, tag = 'input window, operand 0, single buffered']
    #allocation3 [shape = 's32[1]{0}', space=sflag, size = 0x4, scoped, tag = 'scoped memory for _lambda_.1']
    #allocation4 [shape = 's32[1]{0}', space=sflag, size = 0x4, scoped, tag = 'scoped memory for _lambda_.1']
    #allocation5 [shape = 'u8[8192]{0}', space=vmem, size = 0x2000, scoped, tag = 'input window, operand 1, single buffered']
    #allocation6 [shape = 's32[1]{0}', space=sflag, size = 0x4, scoped, tag = 'scoped memory for _lambda_.1']
    #allocation7 [shape = 'u8[32768]{0}', space=vmem, size = 0x8000, scoped, tag = 'input window, operand 3, single buffered']
    #allocation8 [shape = 'u8[32768]{0}', space=vmem, size = 0x8000, scoped, tag = 'input window, operand 5, single buffered']
    #allocation9 [shape = 's32[1]{0}', space=sflag, size = 0x4, scoped, tag = 'scoped memory for _lambda_.1']
    #allocation10 [shape = 'u8[4096]{0}', space=vmem, size = 0x1000, scoped, tag = 'output window, operand 0, single buffered']
    %12 = vsyncpa [#allocation3], 0
    %13 = vsyncpa [#allocation6], 0
    %14 = vsyncpa [#allocation9], 0
    %15 = vsyncpa [#allocation4], 0
    // Predicated region
    $region2: #{_lambda_.1} parent=1 // pred_check
      _
    $region3: #{_lambda_.1} parent=1 // pred_check_branch
      %17 = sbr.rel (0) target = $region5
    $region4: #{_lambda_.1} parent=1 // pred_region
      %s19 = ssub.s32 128, 128
      %20 = vsyncadd [#allocation3], %s19
      %s22 = sshll.u32 [#allocation2], 4
      %s23 = int_to_ptr.vmem [resolvable:$true] %s22
      %25 = dma.hbm_to_vmem [thread:$0]  %s0, 128, %s23, [#allocation3]
    $region5: #{_lambda_.1} parent=1 // pred_fallthru
      _
    // Predicated region
    $region6: #{_lambda_.1} parent=1 // pred_check
      _
    $region7: #{_lambda_.1} parent=1 // pred_check_branch
      %27 = sbr.rel (0) target = $region9
    $region8: #{_lambda_.1} parent=1 // pred_region
      %s29 = ssub.s32 256, 256
      %30 = vsyncadd [#allocation6], %s29
      %s31 = sshll.u32 [#allocation5], 4
      %s32 = int_to_ptr.vmem [resolvable:$true] %s31
      %37 = dma.hbm_to_vmem [thread:$0]  %s1, 256, %s32, [#allocation6], 64, 64, 4
    $region9: #{_lambda_.1} parent=1 // pred_fallthru
      _
    // Predicated region
    $region10: #{_lambda_.1} parent=1 // pred_check
      _
    $region11: #{_lambda_.1} parent=1 // pred_check_branch
      %39 = sbr.rel (0) target = $region13
    $region12: #{_lambda_.1} parent=1 // pred_region
      _
    $region13: #{_lambda_.1} parent=1 // pred_fallthru
      _
    // Predicated region
    $region14: #{_lambda_.1} parent=1 // pred_check
      _
    $region15: #{_lambda_.1} parent=1 // pred_check_branch
      %41 = sbr.rel (0) target = $region17
    $region16: #{_lambda_.1} parent=1 // pred_region
      %s43 = ssub.s32 1024, 1024
      %44 = vsyncadd [#allocation6], %s43
      %s45 = sshll.u32 [#allocation7], 4
      %s46 = int_to_ptr.vmem [resolvable:$true] %s45
      %51 = dma.hbm_to_vmem [thread:$0]  %s3, 1024, %s46, [#allocation6], 64, 64, 4
    $region17: #{_lambda_.1} parent=1 // pred_fallthru
      _
    // Predicated region
    $region18: #{_lambda_.1} parent=1 // pred_check
      _
    $region19: #{_lambda_.1} parent=1 // pred_check_branch
      %53 = sbr.rel (0) target = $region21
    $region20: #{_lambda_.1} parent=1 // pred_region
      _
    $region21: #{_lambda_.1} parent=1 // pred_fallthru
      _
    // Predicated region
    $region22: #{_lambda_.1} parent=1 // pred_check
      _
    $region23: #{_lambda_.1} parent=1 // pred_check_branch
      %55 = sbr.rel (0) target = $region25
    $region24: #{_lambda_.1} parent=1 // pred_region
      %s57 = ssub.s32 1024, 1024
      %58 = vsyncadd [#allocation9], %s57
      %s59 = sshll.u32 [#allocation8], 4
      %s60 = int_to_ptr.vmem [resolvable:$true] %s59
      %65 = dma.hbm_to_vmem [thread:$0]  %s5, 1024, %s60, [#allocation9], 64, 64, 4
    $region25: #{_lambda_.1} parent=1 // pred_fallthru
      _
    // Predicated region
    $region26: #{_lambda_.1} parent=1 // pred_check
      _
    $region27: #{_lambda_.1} parent=1 // pred_check_branch
      %67 = sbr.rel (0) target = $region29
    $region28: #{_lambda_.1} parent=1 // pred_region
      _
    $region29: #{_lambda_.1} parent=1 // pred_fallthru
      _
    // Predicated region
    $region30: #{_lambda_.1} parent=1 // pred_check
      _
    $region31: #{_lambda_.1} parent=1 // pred_check_branch
      %69 = sbr.rel (0) target = $region33
    $region32: #{_lambda_.1} parent=1 // pred_region
      %70 = dma.done [#allocation3], 128
    $region33: #{_lambda_.1} parent=1 // pred_fallthru
      _
    // Predicated region
    $region34: #{_lambda_.1} parent=1 // pred_check
      _
    $region35: #{_lambda_.1} parent=1 // pred_check_branch
      %72 = sbr.rel (0) target = $region37
    $region36: #{_lambda_.1} parent=1 // pred_region
      %73 = dma.done [#allocation6], 256
    $region37: #{_lambda_.1} parent=1 // pred_fallthru
      _
    // Predicated region
    $region38: #{_lambda_.1} parent=1 // pred_check
      _
    $region39: #{_lambda_.1} parent=1 // pred_check_branch
      %75 = sbr.rel (0) target = $region41
    $region40: #{_lambda_.1} parent=1 // pred_region
      %76 = dma.done [#allocation6], 1024
    $region41: #{_lambda_.1} parent=1 // pred_fallthru
      _
    // Predicated region
    $region42: #{_lambda_.1} parent=1 // pred_check
      _
    $region43: #{_lambda_.1} parent=1 // pred_check_branch
      %78 = sbr.rel (0) target = $region45
    $region44: #{_lambda_.1} parent=1 // pred_region
      %79 = dma.done [#allocation9], 1024
    $region45: #{_lambda_.1} parent=1 // pred_fallthru
      _
    %v81 = vld [vmem:[#allocation2] sm:$0xff]
    %v82 = vpack.c.bf16 %v81, %v81
    %v83 = vld [vmem:[#allocation5] sm:$0xf]
    %v84 = vld [vmem:[#allocation5 + $0x4] sm:$0xf]
    %v85 = vld [vmem:[#allocation5 + $0x8] sm:$0xf]
    %v86 = vld [vmem:[#allocation5 + $0xc] sm:$0xf]
    %v87 = vld [vmem:[%s2] sm:$0x1]
    %v89 = vlaneseq
    %v90 = vshrl.u32 %v89, 7
    %v91 = vsub.s32 0, %v90
    %v92 = vrot.slane %v87, %v91
    %v98 = vunpack.c.l.b16 %v83
    %v99 = vunpack.c.l.b16 %v84
    %v100 = vunpack.c.l.b16 %v85
    %v101 = vunpack.c.l.b16 %v86
    %v102 = vpack.c.b16 %v99, %v98
    %v103 = vpack.c.b16 %v101, %v100
    %vm106 = vcmask 261120
    %v108 = vsel %vm106, %v82, 0
    %110 = vmatprep.subr.bf16.mxu0 0
    %111 = vmatpush1.bf16.msra.mxu0 0
    %112 = vmatprep.subr.bf16.mxu0 0
    %113 = vmatpush1.bf16.msra.mxu0 0
    %114 = vmatprep.subr.bf16.mxu0 0
    %115 = vmatpush1.bf16.msra.mxu0 0
    %116 = vmatprep.subr.bf16.mxu0 0
    %117 = vmatpush1.bf16.msra.mxu0 0
    %118 = vmatprep.subr.bf16.mxu0 0
    %119 = vmatpush1.bf16.msra.mxu0 0
    %120 = vmatprep.subr.bf16.mxu0 0
    %121 = vmatpush1.bf16.msra.mxu0 0
    %122 = vmatprep.subr.bf16.mxu0 0
    %123 = vmatpush1.bf16.msra.mxu0 %v103
    %124 = vmatprep.subr.bf16.mxu0 0
    %125 = vmatpush1.bf16.msra.mxu0 %v102
    %126 = vmatprep.subr.bf16.mxu0 0
    %127 = vmatpush2.bf16.msra.mxu0 0
    %128 = vmatprep.subr.bf16.mxu0 0
    %129 = vmatpush2.bf16.msra.mxu0 0
    %130 = vmatprep.subr.bf16.mxu0 0
    %131 = vmatpush2.bf16.msra.mxu0 0
    %132 = vmatprep.subr.bf16.mxu0 0
    %133 = vmatpush2.bf16.msra.mxu0 0
    %134 = vmatprep.subr.bf16.mxu0 0
    %135 = vmatpush2.bf16.msra.mxu0 0
    %136 = vmatprep.subr.bf16.mxu0 0
    %137 = vmatpush2.bf16.msra.mxu0 0
    %138 = vmatprep.subr.bf16.mxu0 0
    %139 = vmatpush2.bf16.msra.mxu0 0
    %140 = vmatprep.subr.bf16.mxu0 0
    %141 = vmatpush2.bf16.msra.mxu0 0
    %142 = vmatprep.mubr.bf16.mxu0 0
    %143 = vmatmul.mubr.bf16.gmra.mxu0 %v108
    %v144 = vpop.f32.mrf.mxu0
    %v145 = vadd.f32 %v92, %v144
    %v146 = vpop.f32.mrf.mxu0
    %v147 = vpop.f32.mrf.mxu0
    %v148 = vpop.f32.mrf.mxu0
    %149 = vdwg.mxu0
    %vm150 = vcmp.gt.f32.partialorder %v145, 0.0
    %v151 = vmul.f32 %v145, 0.01
    %v152 = vsel %vm150, %v145, %v151
    %v153 = vpack.c.bf16 %v152, %v152
    %v154 = vld [vmem:[#allocation7] sm:$0xf]
    %v155 = vld [vmem:[#allocation7 + $0x4] sm:$0xf]
    %v156 = vld [vmem:[#allocation7 + $0x8] sm:$0xf]
    %v157 = vld [vmem:[#allocation7 + $0xc] sm:$0xf]
    %v158 = vld [vmem:[#allocation7 + $0x10] sm:$0xf]
    %v159 = vld [vmem:[#allocation7 + $0x14] sm:$0xf]
    %v160 = vld [vmem:[#allocation7 + $0x18] sm:$0xf]
    %v161 = vld [vmem:[#allocation7 + $0x1c] sm:$0xf]
    %v162 = vld [vmem:[#allocation7 + $0x20] sm:$0xf]
    %v163 = vld [vmem:[#allocation7 + $0x24] sm:$0xf]
    %v164 = vld [vmem:[#allocation7 + $0x28] sm:$0xf]
    %v165 = vld [vmem:[#allocation7 + $0x2c] sm:$0xf]
    %v166 = vld [vmem:[#allocation7 + $0x30] sm:$0xf]
    %v167 = vld [vmem:[#allocation7 + $0x34] sm:$0xf]
    %v168 = vld [vmem:[#allocation7 + $0x38] sm:$0xf]
    %v169 = vld [vmem:[#allocation7 + $0x3c] sm:$0xf]
    %v170 = vld [vmem:[%s4] sm:$0x1]
    %v172 = vlaneseq
    %v173 = vshrl.u32 %v172, 7
    %v174 = vsub.s32 0, %v173
    %v175 = vrot.slane %v170, %v174
    %v193 = vunpack.c.l.b16 %v154
    %v194 = vunpack.c.l.b16 %v155
    %v195 = vunpack.c.l.b16 %v156
    %v196 = vunpack.c.l.b16 %v157
    %v197 = vunpack.c.l.b16 %v158
    %v198 = vunpack.c.l.b16 %v159
    %v199 = vunpack.c.l.b16 %v160
    %v200 = vunpack.c.l.b16 %v161
    %v201 = vunpack.c.l.b16 %v162
    %v202 = vunpack.c.l.b16 %v163
    %v203 = vunpack.c.l.b16 %v164
    %v204 = vunpack.c.l.b16 %v165
    %v205 = vunpack.c.l.b16 %v166
    %v206 = vunpack.c.l.b16 %v167
    %v207 = vunpack.c.l.b16 %v168
    %v208 = vunpack.c.l.b16 %v169
    %v209 = vpack.c.b16 %v194, %v193
    %v210 = vpack.c.b16 %v196, %v195
    %v211 = vpack.c.b16 %v198, %v197
    %v212 = vpack.c.b16 %v200, %v199
    %v213 = vpack.c.b16 %v202, %v201
    %v214 = vpack.c.b16 %v204, %v203
    %v215 = vpack.c.b16 %v206, %v205
    %v216 = vpack.c.b16 %v208, %v207
    %225 = vmatprep.subr.bf16.mxu0 0
    %226 = vmatpush1.bf16.msra.mxu0 %v216
    %227 = vmatprep.subr.bf16.mxu0 0
    %228 = vmatpush1.bf16.msra.mxu0 %v215
    %229 = vmatprep.subr.bf16.mxu0 0
    %230 = vmatpush1.bf16.msra.mxu0 %v214
    %231 = vmatprep.subr.bf16.mxu0 0
    %232 = vmatpush1.bf16.msra.mxu0 %v213
    %233 = vmatprep.subr.bf16.mxu0 0
    %234 = vmatpush1.bf16.msra.mxu0 %v212
    %235 = vmatprep.subr.bf16.mxu0 0
    %236 = vmatpush1.bf16.msra.mxu0 %v211
    %237 = vmatprep.subr.bf16.mxu0 0
    %238 = vmatpush1.bf16.msra.mxu0 %v210
    %239 = vmatprep.subr.bf16.mxu0 0
    %240 = vmatpush1.bf16.msra.mxu0 %v209
    %241 = vmatprep.subr.bf16.mxu0 0
    %242 = vmatpush2.bf16.msra.mxu0 0
    %243 = vmatprep.subr.bf16.mxu0 0
    %244 = vmatpush2.bf16.msra.mxu0 0
    %245 = vmatprep.subr.bf16.mxu0 0
    %246 = vmatpush2.bf16.msra.mxu0 0
    %247 = vmatprep.subr.bf16.mxu0 0
    %248 = vmatpush2.bf16.msra.mxu0 0
    %249 = vmatprep.subr.bf16.mxu0 0
    %250 = vmatpush2.bf16.msra.mxu0 0
    %251 = vmatprep.subr.bf16.mxu0 0
    %252 = vmatpush2.bf16.msra.mxu0 0
    %253 = vmatprep.subr.bf16.mxu0 0
    %254 = vmatpush2.bf16.msra.mxu0 0
    %255 = vmatprep.subr.bf16.mxu0 0
    %256 = vmatpush2.bf16.msra.mxu0 0
    %257 = vmatprep.mubr.bf16.mxu0 0
    %258 = vmatmul.mubr.bf16.gmra.mxu0 %v153
    %v259 = vpop.f32.mrf.mxu0
    %v260 = vadd.f32 %v175, %v259
    %v261 = vpop.f32.mrf.mxu0
    %v262 = vpop.f32.mrf.mxu0
    %v263 = vpop.f32.mrf.mxu0
    %264 = vdwg.mxu0
    %vm265 = vcmp.gt.f32.partialorder %v260, 0.0
    %v266 = vmul.f32 %v260, 0.01
    %v267 = vsel %vm265, %v260, %v266
    %v268 = vpack.c.bf16 %v267, %v267
    %v269 = vld [vmem:[#allocation8] sm:$0xf]
    %v270 = vld [vmem:[#allocation8 + $0x4] sm:$0xf]
    %v271 = vld [vmem:[#allocation8 + $0x8] sm:$0xf]
    %v272 = vld [vmem:[#allocation8 + $0xc] sm:$0xf]
    %v273 = vld [vmem:[#allocation8 + $0x10] sm:$0xf]
    %v274 = vld [vmem:[#allocation8 + $0x14] sm:$0xf]
    %v275 = vld [vmem:[#allocation8 + $0x18] sm:$0xf]
    %v276 = vld [vmem:[#allocation8 + $0x1c] sm:$0xf]
    %v277 = vld [vmem:[#allocation8 + $0x20] sm:$0xf]
    %v278 = vld [vmem:[#allocation8 + $0x24] sm:$0xf]
    %v279 = vld [vmem:[#allocation8 + $0x28] sm:$0xf]
    %v280 = vld [vmem:[#allocation8 + $0x2c] sm:$0xf]
    %v281 = vld [vmem:[#allocation8 + $0x30] sm:$0xf]
    %v282 = vld [vmem:[#allocation8 + $0x34] sm:$0xf]
    %v283 = vld [vmem:[#allocation8 + $0x38] sm:$0xf]
    %v284 = vld [vmem:[#allocation8 + $0x3c] sm:$0xf]
    %v285 = vld [vmem:[%s6] sm:$0x1]
    %v287 = vlaneseq
    %v288 = vshrl.u32 %v287, 7
    %v289 = vsub.s32 0, %v288
    %v290 = vrot.slane %v285, %v289
    %v308 = vunpack.c.l.b16 %v269
    %v309 = vunpack.c.l.b16 %v270
    %v310 = vunpack.c.l.b16 %v271
    %v311 = vunpack.c.l.b16 %v272
    %v312 = vunpack.c.l.b16 %v273
    %v313 = vunpack.c.l.b16 %v274
    %v314 = vunpack.c.l.b16 %v275
    %v315 = vunpack.c.l.b16 %v276
    %v316 = vunpack.c.l.b16 %v277
    %v317 = vunpack.c.l.b16 %v278
    %v318 = vunpack.c.l.b16 %v279
    %v319 = vunpack.c.l.b16 %v280
    %v320 = vunpack.c.l.b16 %v281
    %v321 = vunpack.c.l.b16 %v282
    %v322 = vunpack.c.l.b16 %v283
    %v323 = vunpack.c.l.b16 %v284
    %v324 = vpack.c.b16 %v309, %v308
    %v325 = vpack.c.b16 %v311, %v310
    %v326 = vpack.c.b16 %v313, %v312
    %v327 = vpack.c.b16 %v315, %v314
    %v328 = vpack.c.b16 %v317, %v316
    %v329 = vpack.c.b16 %v319, %v318
    %v330 = vpack.c.b16 %v321, %v320
    %v331 = vpack.c.b16 %v323, %v322
    %340 = vmatprep.subr.bf16.mxu0 0
    %341 = vmatpush1.bf16.msra.mxu0 %v331
    %342 = vmatprep.subr.bf16.mxu0 0
    %343 = vmatpush1.bf16.msra.mxu0 %v330
    %344 = vmatprep.subr.bf16.mxu0 0
    %345 = vmatpush1.bf16.msra.mxu0 %v329
    %346 = vmatprep.subr.bf16.mxu0 0
    %347 = vmatpush1.bf16.msra.mxu0 %v328
    %348 = vmatprep.subr.bf16.mxu0 0
    %349 = vmatpush1.bf16.msra.mxu0 %v327
    %350 = vmatprep.subr.bf16.mxu0 0
    %351 = vmatpush1.bf16.msra.mxu0 %v326
    %352 = vmatprep.subr.bf16.mxu0 0
    %353 = vmatpush1.bf16.msra.mxu0 %v325
    %354 = vmatprep.subr.bf16.mxu0 0
    %355 = vmatpush1.bf16.msra.mxu0 %v324
    %356 = vmatprep.subr.bf16.mxu0 0
    %357 = vmatpush2.bf16.msra.mxu0 0
    %358 = vmatprep.subr.bf16.mxu0 0
    %359 = vmatpush2.bf16.msra.mxu0 0
    %360 = vmatprep.subr.bf16.mxu0 0
    %361 = vmatpush2.bf16.msra.mxu0 0
    %362 = vmatprep.subr.bf16.mxu0 0
    %363 = vmatpush2.bf16.msra.mxu0 0
    %364 = vmatprep.subr.bf16.mxu0 0
    %365 = vmatpush2.bf16.msra.mxu0 0
    %366 = vmatprep.subr.bf16.mxu0 0
    %367 = vmatpush2.bf16.msra.mxu0 0
    %368 = vmatprep.subr.bf16.mxu0 0
    %369 = vmatpush2.bf16.msra.mxu0 0
    %370 = vmatprep.subr.bf16.mxu0 0
    %371 = vmatpush2.bf16.msra.mxu0 0
    %372 = vmatprep.mubr.bf16.mxu0 0
    %373 = vmatmul.mubr.bf16.gmra.mxu0 %v268
    %v374 = vpop.f32.mrf.mxu0
    %v375 = vadd.f32 %v290, %v374
    %v376 = vpop.f32.mrf.mxu0
    %v377 = vpop.f32.mrf.mxu0
    %v378 = vpop.f32.mrf.mxu0
    %379 = vdwg.mxu0
    %380 = vst [vmem:[#allocation10] sm:$0xff] %v375
    // Predicated region
    $region46: #{_lambda_.1} parent=1 // pred_check
      _
    $region47: #{_lambda_.1} parent=1 // pred_check_branch
      %382 = sbr.rel (0) target = $region49
    $region48: #{_lambda_.1} parent=1 // pred_region
      %s384 = ssub.s32 128, 128
      %385 = vsyncadd [#allocation4], %s384
      %s387 = sshll.u32 [#allocation10], 4
      %s388 = int_to_ptr.vmem [resolvable:$true] %s387
      %390 = dma.vmem_to_hbm [thread:$0]  %s388, 128, %s7, [#allocation4]
    $region49: #{_lambda_.1} parent=1 // pred_fallthru
      _
    // Predicated region
    $region50: #{_lambda_.1} parent=1 // pred_check
      _
    $region51: #{_lambda_.1} parent=1 // pred_check_branch
      %392 = sbr.rel (0) target = $region53
    $region52: #{_lambda_.1} parent=1 // pred_region
      %393 = dma.done [#allocation4], 128
    $region53: #{_lambda_.1} parent=1 // pred_fallthru
      _
    %394 = vsyncpa [#allocation3], 1
    %395 = vsyncpa [#allocation6], 1
    %396 = vsyncpa [#allocation9], 1
    %397 = vsyncpa [#allocation4], 1

</llo_original>
